<compile_context>
chip_gen: v6e
topology: v6e:2x2x1
jax: 0.10.0
libtpu: 0.0.40
codegen_flags: <defaults>
</compile_context>

<pallas_src>
import functools

import jax
import jax.numpy as jnp
from jax.experimental import pallas as pl
from jax.experimental.pallas import tpu as pltpu


_RCE_SCALE = 9.210340371976182  # == -log(1e-4), the only non-zero log(one_hot_clipped) value


def _sce_kernel(pred_ref, labels_ref, out_ref, *, alpha, beta, n_total, tile_n):
    i = pl.program_id(0)

    # ---- init resident accumulator on the first grid step ----
    @pl.when(i == 0)
    def _init():
        out_ref[...] = jnp.zeros_like(out_ref)

    logits = pred_ref[...].astype(jnp.float32)   # (C, TILE_N), batch lane-dense
    labels = labels_ref[...]                     # (1, TILE_N) int32

    # one-hot mask via sublane iota compare (classes on sublanes)
    cls = jax.lax.broadcasted_iota(jnp.int32, logits.shape, 0)
    onehot = cls == labels                       # (C, TILE_N) bool

    # ---- shared softmax pieces (per-sample reductions are sublane reductions) ----
    m = jnp.max(logits, axis=0, keepdims=True)   # (1, TILE_N)
    shifted = logits - m
    e = jnp.exp(shifted)
    sum_e = jnp.sum(e, axis=0, keepdims=True)    # (1, TILE_N)

    # ---- CE:  -log_softmax[label] = log(sum_e) - shifted[label] ----
    shifted_lbl = jnp.sum(jnp.where(onehot, shifted, 0.0), axis=0, keepdims=True)
    ce_per = jnp.log(sum_e) - shifted_lbl        # (1, TILE_N)

    # ---- RCE:  -log(1e-4) * (sum_j clip(p)_j - clip(p)_label) ----
    probs = e * pl.reciprocal(sum_e, approx=False)
    probs = jnp.clip(probs, 1e-07, 1.0)
    p_sum = jnp.sum(probs, axis=0, keepdims=True)
    p_lbl = jnp.sum(jnp.where(onehot, probs, 0.0), axis=0, keepdims=True)
    rce_per = _RCE_SCALE * (p_sum - p_lbl)       # (1, TILE_N)

    # ---- mask padded samples of the (possibly partial) last tile ----
    lane = jax.lax.broadcasted_iota(jnp.int32, (1, tile_n), 1)
    valid = (i * tile_n + lane) < n_total
    ce_per = jnp.where(valid, ce_per, 0.0)
    rce_per = jnp.where(valid, rce_per, 0.0)

    contrib = (alpha * jnp.sum(ce_per, axis=1, keepdims=True)
               + beta * jnp.sum(rce_per, axis=1, keepdims=True))   # (1, 1)
    out_ref[...] += contrib

    # ---- finalize: mean over the batch ----
    @pl.when(i == pl.num_programs(0) - 1)
    def _fini():
        out_ref[...] = out_ref[...] * (1.0 / n_total)


def _choose_tile_n(n, c, itemsize):
    """Pick a lane-axis tile: full extent for small N, else a 128-multiple sized so a
    double-buffered tile stays a few MiB (fits v5e 16 MiB / v7x 32 MiB scoped VMEM)."""
    if n <= 1024:
        return n                                   # full-extent block is always legal
    budget = 4 * 1024 * 1024                       # ~4 MiB per input buffer
    t = budget // max(c * itemsize, 1)
    t = max(128, (min(int(t), 8192) // 128) * 128)
    return min(t, (n // 128) * 128)


def sce_loss(pred, labels, alpha=1.0, beta=1.0, tile_n=None):
    """pred: (N, C) float logits; labels: (N,) int class indices. Returns scalar f32."""
    n, c = pred.shape
    pred_t = jnp.transpose(pred)                       # (C, N): batch on lanes
    labels2d = labels.astype(jnp.int32).reshape(1, n)  # (1, N)

    if tile_n is None:
        tile_n = _choose_tile_n(n, c, pred.dtype.itemsize)
    grid = (pl.cdiv(n, tile_n),)

    kernel = functools.partial(_sce_kernel, alpha=float(alpha), beta=float(beta),
                               n_total=n, tile_n=tile_n)

    out = pl.pallas_call(
        kernel,
        out_shape=jax.ShapeDtypeStruct((1, 1), jnp.float32),
        grid=grid,
        in_specs=[
            pl.BlockSpec((c, tile_n), lambda i: (0, i)),   # logits tile
            pl.BlockSpec((1, tile_n), lambda i: (0, i)),   # labels tile
        ],
        out_specs=pl.BlockSpec((1, 1), lambda i: (0, 0)),  # resident scalar accumulator
        compiler_params=pltpu.CompilerParams(
            dimension_semantics=("arbitrary",),            # reduction over batch tiles
            vmem_limit_bytes=32 * 1024 * 1024,
        ),
    )(pred_t, labels2d)
    return out[0, 0]


def _reference_sce(pred, labels, alpha=1.0, beta=1.0, num_classes=2):
    # plain-JAX reference mirroring the PyTorch module
    log_probs = jax.nn.log_softmax(pred.astype(jnp.float32), axis=1)
    one_hot = jax.nn.one_hot(labels, num_classes, dtype=jnp.float32)
    ce = jnp.mean(-jnp.sum(one_hot * log_probs, axis=1))
    probs = jnp.clip(jax.nn.softmax(pred.astype(jnp.float32), axis=1), 1e-07, 1.0)
    one_hot_c = jnp.clip(one_hot, 1e-04, 1.0)
    rce = jnp.mean(-jnp.sum(probs * jnp.log(one_hot_c), axis=1))
    return alpha * ce + beta * rce


if __name__ == "__main__":
    key = jax.random.PRNGKey(0)
    k_pred, k_lab, k_pred2, k_lab2 = jax.random.split(key, 4)

    # Shape implied by the module defaults (num_classes=2).
    N, NUM_CLASSES = 8, 2
    ALPHA, BETA = 1.0, 1.0

    pred = jax.random.normal(k_pred, (N, NUM_CLASSES), dtype=jnp.float32)
    labels = jax.random.randint(k_lab, (N,), 0, NUM_CLASSES, dtype=jnp.int32)

    loss = sce_loss(pred, labels, alpha=ALPHA, beta=BETA)
    loss = jax.block_until_ready(loss)
    ref = _reference_sce(pred, labels, alpha=ALPHA, beta=BETA, num_classes=NUM_CLASSES)
    assert jnp.allclose(loss, ref, rtol=1e-5, atol=1e-5), (loss, ref)

    # Second check: forces multiple grid steps + a masked partial last tile.
    N2 = 300
    pred2 = jax.random.normal(k_pred2, (N2, NUM_CLASSES), dtype=jnp.float32)
    labels2 = jax.random.randint(k_lab2, (N2,), 0, NUM_CLASSES, dtype=jnp.int32)
    loss2 = jax.block_until_ready(sce_loss(pred2, labels2, alpha=ALPHA, beta=BETA, tile_n=128))
    ref2 = _reference_sce(pred2, labels2, alpha=ALPHA, beta=BETA, num_classes=NUM_CLASSES)
    assert jnp.allclose(loss2, ref2, rtol=1e-5, atol=1e-5), (loss2, ref2)

    print("KERNEL_OK")
</pallas_src>

<mosaic_0001>
module attributes {stable_mosaic.version = 11 : i64} {
  func.func @_sce_kernel(%arg0: i32, %arg1: memref<2x8xf32, #tpu.memory_space<vmem>>, %arg2: memref<1x8xi32, #tpu.memory_space<vmem>>, %arg3: memref<1x1xf32, #tpu.memory_space<vmem>>) attributes {dimension_semantics = [#tpu.dimension_semantics<arbitrary>], iteration_bounds = array<i64: 1>, scalar_prefetch = 0 : i64, scratch_operands = 0 : i64, tpu.core_type = #tpu.core_type<tc>, window_params = [{transform_indices = @transform_0, window_bounds = array<i64: 2, 8>}, {transform_indices = @transform_1, window_bounds = array<i64: 1, 8>}, {pipeline_mode = #tpu.pipeline_mode<synchronous>, transform_indices = @transform_2, window_bounds = array<i64: 1, 1>}]} {
    %c0_i32 = arith.constant 0 : i32
    %0 = arith.cmpi eq, %arg0, %c0_i32 : i32
    %1 = arith.extui %0 : i1 to i32
    %c0_i32_0 = arith.constant 0 : i32
    %2 = arith.cmpi ne, %1, %c0_i32_0 : i32
    scf.if %2 {
      %cst_26 = arith.constant 0.000000e+00 : f32
      %62 = vector.broadcast %cst_26 : f32 to vector<1x1xf32>
      %c0_27 = arith.constant 0 : index
      %c0_28 = arith.constant 0 : index
      %63 = vector.load %arg3[%c0_27, %c0_28] : memref<1x1xf32, #tpu.memory_space<vmem>>, vector<1x1xf32>
      tpu.vector_store %arg3[%c0_27, %c0_28], %62 {strides = array<i32>} : memref<1x1xf32, #tpu.memory_space<vmem>>, vector<1x1xf32>,
    } else {
    }
    %c0 = arith.constant 0 : index
    %c0_1 = arith.constant 0 : index
    %3 = vector.load %arg1[%c0, %c0_1] : memref<2x8xf32, #tpu.memory_space<vmem>>, vector<2x8xf32>
    %c0_2 = arith.constant 0 : index
    %c0_3 = arith.constant 0 : index
    %4 = vector.load %arg2[%c0_2, %c0_3] : memref<1x8xi32, #tpu.memory_space<vmem>>, vector<1x8xi32>
    %5 = tpu.iota {dimensions = array<i32: 0>} : vector<2x8xi32>
    %6 = vector.broadcast %4 : vector<1x8xi32> to vector<2x8xi32>
    %7 = arith.cmpi eq, %5, %6 : vector<2x8xi32>
    %cst = arith.constant dense<0xFF800000> : vector<8xf32>
    %8 = vector.multi_reduction <maximumf>, %3, %cst [0] : vector<2x8xf32> to vector<8xf32>
    %9 = vector.shape_cast %8 : vector<8xf32> to vector<1x8xf32>
    %10 = vector.broadcast %9 : vector<1x8xf32> to vector<2x8xf32>
    %11 = arith.subf %3, %10 : vector<2x8xf32>
    %12 = math.exp %11 : vector<2x8xf32>
    %cst_4 = arith.constant dense<0.000000e+00> : vector<8xf32>
    %13 = vector.multi_reduction <add>, %12, %cst_4 [0] : vector<2x8xf32> to vector<8xf32>
    %14 = vector.shape_cast %13 : vector<8xf32> to vector<1x8xf32>
    %cst_5 = arith.constant 0.000000e+00 : f32
    %15 = vector.broadcast %cst_5 : f32 to vector<2x8xf32>
    %16 = arith.select %7, %11, %15 : vector<2x8xi1>, vector<2x8xf32>
    %cst_6 = arith.constant dense<0.000000e+00> : vector<8xf32>
    %17 = vector.multi_reduction <add>, %16, %cst_6 [0] : vector<2x8xf32> to vector<8xf32>
    %18 = vector.shape_cast %17 : vector<8xf32> to vector<1x8xf32>
    %19 = math.log %14 : vector<1x8xf32>
    %20 = arith.subf %19, %18 : vector<1x8xf32>
    %21 = tpu.reciprocal %14 : vector<1x8xf32> -> vector<1x8xf32>
    %22 = vector.broadcast %21 : vector<1x8xf32> to vector<2x8xf32>
    %23 = arith.mulf %12, %22 : vector<2x8xf32>
    %cst_7 = arith.constant 1.000000e-07 : f32
    %cst_8 = arith.constant 1.000000e+00 : f32
    %24 = vector.broadcast %cst_7 : f32 to vector<2x8xf32>
    %25 = arith.maximumf %24, %23 : vector<2x8xf32>
    %26 = vector.broadcast %cst_8 : f32 to vector<2x8xf32>
    %27 = arith.minimumf %26, %25 : vector<2x8xf32>
    %cst_9 = arith.constant dense<0.000000e+00> : vector<8xf32>
    %28 = vector.multi_reduction <add>, %27, %cst_9 [0] : vector<2x8xf32> to vector<8xf32>
    %29 = vector.shape_cast %28 : vector<8xf32> to vector<1x8xf32>
    %cst_10 = arith.constant 0.000000e+00 : f32
    %30 = vector.broadcast %cst_10 : f32 to vector<2x8xf32>
    %31 = arith.select %7, %27, %30 : vector<2x8xi1>, vector<2x8xf32>
    %cst_11 = arith.constant dense<0.000000e+00> : vector<8xf32>
    %32 = vector.multi_reduction <add>, %31, %cst_11 [0] : vector<2x8xf32> to vector<8xf32>
    %33 = vector.shape_cast %32 : vector<8xf32> to vector<1x8xf32>
    %34 = arith.subf %29, %33 : vector<1x8xf32>
    %cst_12 = arith.constant 9.21034049 : f32
    %35 = vector.broadcast %cst_12 : f32 to vector<1x8xf32>
    %36 = arith.mulf %35, %34 : vector<1x8xf32>
    %37 = tpu.iota {dimensions = array<i32: 1>} : vector<1x8xi32>
    %c8_i32 = arith.constant 8 : i32
    %38 = arith.muli %arg0, %c8_i32 : i32
    %39 = vector.broadcast %38 : i32 to vector<1x8xi32>
    %40 = arith.addi %39, %37 : vector<1x8xi32>
    %c8_i32_13 = arith.constant 8 : i32
    %41 = vector.broadcast %c8_i32_13 : i32 to vector<1x8xi32>
    %42 = arith.cmpi slt, %40, %41 : vector<1x8xi32>
    %cst_14 = arith.constant 0.000000e+00 : f32
    %43 = vector.broadcast %cst_14 : f32 to vector<1x8xf32>
    %44 = arith.select %42, %20, %43 : vector<1x8xi1>, vector<1x8xf32>
    %cst_15 = arith.constant 0.000000e+00 : f32
    %45 = vector.broadcast %cst_15 : f32 to vector<1x8xf32>
    %46 = arith.select %42, %36, %45 : vector<1x8xi1>, vector<1x8xf32>
    %cst_16 = arith.constant dense<0.000000e+00> : vector<1xf32>
    %47 = vector.multi_reduction <add>, %44, %cst_16 [1] : vector<1x8xf32> to vector<1xf32>
    %48 = vector.shape_cast %47 : vector<1xf32> to vector<1x1xf32>
    %cst_17 = arith.constant 1.000000e+00 : f32
    %49 = vector.broadcast %cst_17 : f32 to vector<1x1xf32>
    %50 = arith.mulf %49, %48 : vector<1x1xf32>
    %cst_18 = arith.constant dense<0.000000e+00> : vector<1xf32>
    %51 = vector.multi_reduction <add>, %46, %cst_18 [1] : vector<1x8xf32> to vector<1xf32>
    %52 = vector.shape_cast %51 : vector<1xf32> to vector<1x1xf32>
    %cst_19 = arith.constant 1.000000e+00 : f32
    %53 = vector.broadcast %cst_19 : f32 to vector<1x1xf32>
    %54 = arith.mulf %53, %52 : vector<1x1xf32>
    %55 = arith.addf %50, %54 : vector<1x1xf32>
    %c0_20 = arith.constant 0 : index
    %c0_21 = arith.constant 0 : index
    %56 = vector.load %arg3[%c0_20, %c0_21] : memref<1x1xf32, #tpu.memory_space<vmem>>, vector<1x1xf32>
    %57 = arith.addf %56, %55 : vector<1x1xf32>
    %c0_22 = arith.constant 0 : index
    %c0_23 = arith.constant 0 : index
    %58 = vector.load %arg3[%c0_22, %c0_23] : memref<1x1xf32, #tpu.memory_space<vmem>>, vector<1x1xf32>
    tpu.vector_store %arg3[%c0_22, %c0_23], %57 {strides = array<i32>} : memref<1x1xf32, #tpu.memory_space<vmem>>, vector<1x1xf32>,
    %c0_i32_24 = arith.constant 0 : i32
    %59 = arith.cmpi eq, %arg0, %c0_i32_24 : i32
    %60 = arith.extui %59 : i1 to i32
    %c0_i32_25 = arith.constant 0 : i32
    %61 = arith.cmpi ne, %60, %c0_i32_25 : i32
    scf.if %61 {
      %c0_26 = arith.constant 0 : index
      %c0_27 = arith.constant 0 : index
      %62 = vector.load %arg3[%c0_26, %c0_27] : memref<1x1xf32, #tpu.memory_space<vmem>>, vector<1x1xf32>
      %cst_28 = arith.constant 1.250000e-01 : f32
      %63 = vector.broadcast %cst_28 : f32 to vector<1x1xf32>
      %64 = arith.mulf %62, %63 : vector<1x1xf32>
      %c0_29 = arith.constant 0 : index
      %c0_30 = arith.constant 0 : index
      %65 = vector.load %arg3[%c0_29, %c0_30] : memref<1x1xf32, #tpu.memory_space<vmem>>, vector<1x1xf32>
      tpu.vector_store %arg3[%c0_29, %c0_30], %64 {strides = array<i32>} : memref<1x1xf32, #tpu.memory_space<vmem>>, vector<1x1xf32>,
    } else {
    }
    return
  }
  func.func @transform_0(%arg0: i32) -> (i32, i32) {
    %c0_i32 = arith.constant 0 : i32
    %c0_i32_0 = arith.constant 0 : i32
    return %c0_i32, %arg0 : i32, i32
  }
  func.func @transform_1(%arg0: i32) -> (i32, i32) {
    %c0_i32 = arith.constant 0 : i32
    %c0_i32_0 = arith.constant 0 : i32
    return %c0_i32, %arg0 : i32, i32
  }
  func.func @transform_2(%arg0: i32) -> (i32, i32) {
    %c0_i32 = arith.constant 0 : i32
    %c0_i32_0 = arith.constant 0 : i32
    %c0_i32_1 = arith.constant 0 : i32
    return %c0_i32, %c0_i32_0 : i32, i32
  }
}

</mosaic_0001>

<llo_original>
// kernel: tpu_custom_call.1
$region0: #{tpu_custom_call.1}
  #allocation0 [shape = 'u32[]', space=smem, size = 0x4, offset = 0x4, fixed_abs, tag = 'smem constant byte address 0x4 - core index']
  #allocation1 [shape = 'u32[144,128]{1,0:T(1,128)}', space=vmem, size = 0x12000, scoped, tag = 'internal scratch']
  %s0 = inlined_call_operand.hbm [shape: f32[2,8], index: 0, kind: input, shape index: {}]
  %s1 = inlined_call_operand.vmem [shape: s32[1,8], index: 1, kind: input, shape index: {}]
  %s2 = inlined_call_operand.hbm [shape: f32[1,1], index: 2, kind: output, shape index: {}]
  %s3 = sld [smem:[#allocation0]]
  $region30: #{tpu_custom_call.1} parent=0
    _
  %s5 = ssub.s32 1, %s3
  %s6 = scalar_select 0, %s5, %s3
  $region1: #{tpu_custom_call.1} parent=0
    #allocation2 [shape = 'u8[1024]{0}', space=vmem, size = 0x400, scoped, tag = 'input window, operand 0, single buffered']
    #allocation3 [shape = 's32[1]{0}', space=sflag, size = 0x4, scoped, tag = 'scoped memory for tpu_custom_call.1']
    #allocation4 [shape = 's32[1]{0}', space=sflag, size = 0x4, scoped, tag = 'scoped memory for tpu_custom_call.1']
    #allocation5 [shape = 'u8[512]{0}', space=vmem, size = 0x400, scoped, tag = 'output window, operand 0, single buffered']
    %7 = vsyncpa [#allocation3], 0
    %8 = vsyncpa [#allocation4], 0
    // Predicated region
    $region2: #{tpu_custom_call.1} parent=1 // pred_check
      _
    $region3: #{tpu_custom_call.1} parent=1 // pred_check_branch
      %10 = sbr.rel (0) target = $region5
    $region4: #{tpu_custom_call.1} parent=1 // pred_region
      %s12 = ssub.s32 32, 32
      %13 = vsyncadd [#allocation3], %s12
      %s15 = sshll.u32 [#allocation2], 4
      %s16 = int_to_ptr.vmem [resolvable:$true] %s15
      %18 = dma.hbm_to_vmem [thread:$0]  %s0, 32, %s16, [#allocation3]
    $region5: #{tpu_custom_call.1} parent=1 // pred_fallthru
      _
    // Predicated region
    $region6: #{tpu_custom_call.1} parent=1 // pred_check
      _
    $region7: #{tpu_custom_call.1} parent=1 // pred_check_branch
      %20 = sbr.rel (0) target = $region9
    $region8: #{tpu_custom_call.1} parent=1 // pred_region
      _
    $region9: #{tpu_custom_call.1} parent=1 // pred_fallthru
      _
    // Predicated region
    $region10: #{tpu_custom_call.1} parent=1 // pred_check
      _
    $region11: #{tpu_custom_call.1} parent=1 // pred_check_branch
      %22 = sbr.rel (0) target = $region13
    $region12: #{tpu_custom_call.1} parent=1 // pred_region
      %23 = dma.done [#allocation3], 32
    $region13: #{tpu_custom_call.1} parent=1 // pred_fallthru
      _
    %p24 = scmp.eq.s32.totalorder 0, 0
    // Predicated region
    $region14: #{tpu_custom_call.1} parent=1 // pred_check
      %p25 = pneg %p24
    $region15: #{tpu_custom_call.1} parent=1 // pred_check_branch
      %27 = sbr.rel (%p25) target = $region17
    $region16: #{tpu_custom_call.1} parent=1 // pred_region
      %vm28 = vcmask 0
      %29 = vst.msk [vmem:[#allocation5] sm:$0x1] %vm28, 0.0
    $region17: #{tpu_custom_call.1} parent=1 // pred_fallthru
      _
    %v30 = vld [vmem:[#allocation2] sm:$0x3]
    %v31 = vld [vmem:[%s1] sm:$0x1]
    %v32 = vlaneseq
    %v33 = vshrl.u32 %v32, 7
    %v34 = vlaneseq
    %v35 = vshrl.u32 %v34, 7
    %v36 = vsub.s32 0, %v35
    %v37 = vrot.slane %v31, %v36
    %vm38 = vcmp.eq.s32.totalorder %v33, %v37
    %vm39 = vcmask 58368
    %v40 = vsel %vm39, %v30, -inf
    %v41 = vrot.slane %v40, 4
    %v42 = vmax.f32 %v40, %v41
    %v43 = vrot.slane %v42, 2
    %v44 = vmax.f32 %v42, %v43
    %v45 = vrot.slane %v44, 1
    %v46 = vmax.f32 %v44, %v45
    %v47 = vsub.f32 %v30, %v46
    %v48 = vmul.f32 %v47, 1.442695
    %v49 = vpow.pop %v48
    %v50 = vsel %vm39, %v49, 0.0
    %v51 = vrot.slane %v50, 4
    %v52 = vadd.f32 %v50, %v51
    %v53 = vrot.slane %v52, 2
    %v54 = vadd.f32 %v52, %v53
    %v55 = vrot.slane %v54, 1
    %v56 = vadd.f32 %v54, %v55
    %v57 = vsel %vm38, %v47, 0.0
    %v58 = vsel %vm39, %v57, 0.0
    %v59 = vrot.slane %v58, 4
    %v60 = vadd.f32 %v58, %v59
    %v61 = vrot.slane %v60, 2
    %v62 = vadd.f32 %v60, %v61
    %v63 = vrot.slane %v62, 1
    %v64 = vadd.f32 %v62, %v63
    %v65 = vlog2.pop %v56
    %v66 = vmul.f32 %v65, 0.6931472
    %v67 = vsub.f32 %v66, %v64
    %v68 = vrcp.pop %v56
    %v69 = vmul.f32 %v49, %v68
    %v70 = vmax.f32 %v69, 1e-07
    %v71 = vmin.f32 %v70, 1.0
    %v72 = vsel %vm39, %v71, 0.0
    %v73 = vrot.slane %v72, 4
    %v74 = vadd.f32 %v72, %v73
    %v75 = vrot.slane %v74, 2
    %v76 = vadd.f32 %v74, %v75
    %v77 = vrot.slane %v76, 1
    %v78 = vadd.f32 %v76, %v77
    %v79 = vsel %vm38, %v71, 0.0
    %v80 = vsel %vm39, %v79, 0.0
    %v81 = vrot.slane %v80, 4
    %v82 = vadd.f32 %v80, %v81
    %v83 = vrot.slane %v82, 2
    %v84 = vadd.f32 %v82, %v83
    %v85 = vrot.slane %v84, 1
    %v86 = vadd.f32 %v84, %v85
    %v87 = vsub.f32 %v78, %v86
    %v88 = vmul.f32 %v87, 9.2103405
    %v89 = vlaneseq
    %v90 = vand.u32 %v89, 127
    %s91 = smul.u32 0, 8
    %v92 = vstv %s91
    %v93 = vadd.s32 %v92, %v90
    %vm94 = vcmp.lt.s32.totalorder %v93, 8
    %v95 = vsel %vm94, %v67, 0.0
    %v96 = vsel %vm94, %v88, 0.0
    %vm97 = vcmask 64512
    %v98 = vsel %vm97, %v95, 0.0
    %99 = vadd.xlane.f32.xlu0 %v98
    %v100 = vpop.xlane.xlu0 %99
    %v101 = vsel %vm97, %v96, 0.0
    %102 = vadd.xlane.f32.xlu0 %v101
    %v103 = vpop.xlane.xlu0 %102
    %v104 = vadd.f32 %v100, %v103
    %v105 = vld [vmem:[#allocation5] sm:$0x1]
    %v106 = vadd.f32 %v105, %v104
    %vm107 = vcmask 0
    %108 = vst.msk [vmem:[#allocation5] sm:$0x1] %vm107, %v106
    // Predicated region
    $region18: #{tpu_custom_call.1} parent=1 // pred_check
      %p109 = pneg %p24
    $region19: #{tpu_custom_call.1} parent=1 // pred_check_branch
      %111 = sbr.rel (%p109) target = $region21
    $region20: #{tpu_custom_call.1} parent=1 // pred_region
      %v112 = vld [vmem:[#allocation5] sm:$0x1]
      %v113 = vmul.f32 %v112, 0.125
      %114 = vst.msk [vmem:[#allocation5] sm:$0x1] %vm107, %v113
    $region21: #{tpu_custom_call.1} parent=1 // pred_fallthru
      _
    // Predicated region
    $region22: #{tpu_custom_call.1} parent=1 // pred_check
      _
    $region23: #{tpu_custom_call.1} parent=1 // pred_check_branch
      %116 = sbr.rel (0) target = $region25
    $region24: #{tpu_custom_call.1} parent=1 // pred_region
      %s118 = ssub.s32 16, 16
      %119 = vsyncadd [#allocation4], %s118
      %s121 = sshll.u32 [#allocation5], 4
      %s122 = int_to_ptr.vmem [resolvable:$true] %s121
      %124 = dma.vmem_to_hbm [thread:$0]  %s122, 16, %s2, [#allocation4]
    $region25: #{tpu_custom_call.1} parent=1 // pred_fallthru
      _
    // Predicated region
    $region26: #{tpu_custom_call.1} parent=1 // pred_check
      _
    $region27: #{tpu_custom_call.1} parent=1 // pred_check_branch
      %126 = sbr.rel (0) target = $region29
    $region28: #{tpu_custom_call.1} parent=1 // pred_region
      %127 = dma.done [#allocation4], 16
    $region29: #{tpu_custom_call.1} parent=1 // pred_fallthru
      _
    %128 = vsyncpa [#allocation3], 1
    %129 = vsyncpa [#allocation4], 1

</llo_original>
